<compile_context>
chip_gen: v7x
topology: tpu7x:2x2x1
jax: 0.10.0
libtpu: 0.0.40
codegen_flags: <defaults>
</compile_context>

<pallas_src>
import functools

import jax
import jax.numpy as jnp
from jax.experimental import pallas as pl
from jax.experimental.pallas import tpu as pltpu


def _round_up(x: int, m: int) -> int:
    return ((x + m - 1) // m) * m


def _sublane_multiple(dtype) -> int:
    itemsize = jnp.dtype(dtype).itemsize
    if itemsize >= 4:
        return 8
    if itemsize == 2:
        return 16
    return 32


def _pick_tile(padded_dim: int, max_tile: int, align: int) -> int:
    """Largest multiple of `align` <= max_tile that evenly divides padded_dim."""
    if padded_dim <= max_tile:
        return padded_dim
    best = align
    for t in range(align, max_tile + 1, align):
        if padded_dim % t == 0:
            best = t
    return best


# ---------------------------------------------------------------------------
# Kernels.  Weight is pre-transposed to (IN, OUT), so the contraction is a
# plain (tm, tk) @ (tk, tn) matmul on the MXU with an f32 accumulator.
# ---------------------------------------------------------------------------
def _linear_kernel_single_k(x_ref, w_ref, b_ref, o_ref):
    # Whole K fits in one tile: no reduction axis, no accumulator, no pl.when.
    o_ref[...] = (
        jnp.dot(x_ref[...], w_ref[...], preferred_element_type=jnp.float32)
        + b_ref[...].astype(jnp.float32)
    ).astype(o_ref.dtype)


def _linear_kernel_f32_out(x_ref, w_ref, b_ref, o_ref):
    # Multi-K, f32 output: accumulate directly into o_ref (resident across k),
    # no VMEM scratch.  Bias is added once in the finalize branch.
    k = pl.program_id(2)

    @pl.when(k == 0)
    def _():
        o_ref[...] = jnp.zeros_like(o_ref)

    o_ref[...] += jnp.dot(x_ref[...], w_ref[...], preferred_element_type=jnp.float32)

    @pl.when(k == pl.num_programs(2) - 1)
    def _():
        o_ref[...] += b_ref[...].astype(jnp.float32)


def _linear_kernel_acc(x_ref, w_ref, b_ref, o_ref, acc_ref):
    # Multi-K, non-f32 output: f32 scratch accumulator, cast on finalize.
    k = pl.program_id(2)

    @pl.when(k == 0)
    def _():
        acc_ref[...] = jnp.zeros_like(acc_ref)

    acc_ref[...] += jnp.dot(x_ref[...], w_ref[...], preferred_element_type=jnp.float32)

    @pl.when(k == pl.num_programs(2) - 1)
    def _():
        o_ref[...] = (acc_ref[...] + b_ref[...].astype(jnp.float32)).astype(o_ref.dtype)


# ---------------------------------------------------------------------------
# One-time parameter preparation (outside the per-call hot path).
# ---------------------------------------------------------------------------
def prepare_linear_params(weight, bias, mxu_dtype=None):
    """weight: (OUT, IN) PyTorch layout; bias: (OUT,).

    Returns (w_t_padded (INp, OUTp), bias_padded (1, OUTp)).  Transpose and
    lane-padding happen once here so the per-call kernel never pays for them.
    """
    out_dims, in_dims = weight.shape
    in_p = _round_up(in_dims, 128)
    out_p = _round_up(out_dims, 128)
    w = weight
    if (out_p != out_dims) or (in_p != in_dims):
        w = jnp.pad(w, ((0, out_p - out_dims), (0, in_p - in_dims)))
    w_t = jnp.asarray(w).T  # (INp, OUTp)
    if mxu_dtype is not None:
        w_t = w_t.astype(mxu_dtype)
    b = bias if out_p == out_dims else jnp.pad(bias, (0, out_p - out_dims))
    b = b.reshape(1, out_p).astype(jnp.float32)
    return w_t, b


# ---------------------------------------------------------------------------
# Forward pass:  y = x @ W.T + b   (W supplied pre-transposed/padded).
# ---------------------------------------------------------------------------
@functools.partial(
    jax.jit,
    static_argnames=("out_features", "tm_max", "tn_max", "tk_max"),
)
def linear_forward(x, w_t, bias2d, *, out_features,
                   tm_max=512, tn_max=1024, tk_max=1024):
    batch, in_dims = x.shape
    in_p, out_p = w_t.shape
    out_dtype = x.dtype

    # If the prepared weight is narrower (e.g. bf16), feed matching operands to
    # the MXU; accumulation stays f32 inside the kernel.
    if w_t.dtype != x.dtype:
        x = x.astype(w_t.dtype)

    # Batch tile: dtype-aware sublane rounding; cover all of B in a single tile
    # when possible so the weight is streamed from HBM exactly once.
    sub = _sublane_multiple(x.dtype)
    if batch <= tm_max:
        tm = _round_up(batch, sub)
        b_p = tm
    else:
        tm = tm_max
        b_p = _round_up(batch, tm)

    tk = _pick_tile(in_p, tk_max, 128)
    tn = _pick_tile(out_p, tn_max, 128)

    # v7x megacore: keep at least one parallel axis with extent >= 2 when the
    # problem is big enough, so both TensorCores get work.
    if (b_p // tm == 1) and (out_p // tn == 1) and out_p >= 256:
        tn = _pick_tile(out_p, out_p // 2, 128)

    # Pad activations only (cheap, per-call data anyway); zero K-padding is exact.
    if (b_p != batch) or (in_p != in_dims):
        x = jnp.pad(x, ((0, b_p - batch), (0, in_p - in_dims)))

    grid_m, grid_n, grid_k = b_p // tm, out_p // tn, in_p // tk

    itemsize = jnp.dtype(x.dtype).itemsize
    cost = pl.CostEstimate(
        flops=2 * batch * in_dims * out_features,
        transcendentals=0,
        bytes_accessed=(b_p * in_p * grid_n + in_p * out_p * grid_m) * itemsize
        + (out_p + b_p * out_p) * jnp.dtype(out_dtype).itemsize,
    )
    cparams = dict(vmem_limit_bytes=32 * 1024 * 1024)

    if grid_k == 1:
        # Single-K fast path: 2-D grid, no accumulator, no pl.when branches.
        yp = pl.pallas_call(
            _linear_kernel_single_k,
            out_shape=jax.ShapeDtypeStruct((b_p, out_p), out_dtype),
            grid=(grid_m, grid_n),
            in_specs=[
                pl.BlockSpec((tm, in_p), lambda i, j: (i, 0)),
                pl.BlockSpec((in_p, tn), lambda i, j: (0, j)),
                pl.BlockSpec((1, tn), lambda i, j: (0, j)),
            ],
            out_specs=pl.BlockSpec((tm, tn), lambda i, j: (i, j)),
            compiler_params=pltpu.CompilerParams(
                dimension_semantics=("parallel", "parallel"), **cparams),
            cost_estimate=cost,
        )(x, w_t, bias2d)
    else:
        in_specs = [
            pl.BlockSpec((tm, tk), lambda i, j, k: (i, k)),   # x tile
            pl.BlockSpec((tk, tn), lambda i, j, k: (k, j)),   # weight tile (IN, OUT)
            pl.BlockSpec((1, tn), lambda i, j, k: (0, j)),    # bias tile
        ]
        out_spec = pl.BlockSpec((tm, tn), lambda i, j, k: (i, j))
        common = dict(
            out_shape=jax.ShapeDtypeStruct((b_p, out_p), out_dtype),
            grid=(grid_m, grid_n, grid_k),
            in_specs=in_specs,
            out_specs=out_spec,
            compiler_params=pltpu.CompilerParams(
                dimension_semantics=("parallel", "parallel", "arbitrary"), **cparams),
            cost_estimate=cost,
        )
        if out_dtype == jnp.float32:
            # Accumulate directly into the (resident) output block; no scratch.
            yp = pl.pallas_call(_linear_kernel_f32_out, **common)(x, w_t, bias2d)
        else:
            yp = pl.pallas_call(
                _linear_kernel_acc,
                scratch_shapes=[pltpu.VMEM((tm, tn), jnp.float32)],
                **common,
            )(x, w_t, bias2d)

    if b_p == batch and out_p == out_features:
        return yp
    return yp[:batch, :out_features]


def mlp_one_layer(x, weight, bias, *, mxu_dtype=None):
    """Convenience end-to-end wrapper matching MLP_OneLayer.forward.

    For repeated calls, call prepare_linear_params once and reuse its outputs.
    """
    w_t, b2 = prepare_linear_params(weight, bias, mxu_dtype=mxu_dtype)
    return linear_forward(x, w_t, b2, out_features=weight.shape[0])


if __name__ == "__main__":
    key = jax.random.PRNGKey(0)
    k_x, k_w, k_b = jax.random.split(key, 3)

    batch, in_dims, out_dims = 8, 32, 64

    # Deterministic init mirroring the PyTorch module:
    #   kaiming_normal_(weight): std = sqrt(2 / fan_in), fan_in = in_dims
    #   normal_(bias, mean=0, std=1)
    w_std = (2.0 / in_dims) ** 0.5
    weight = jax.random.normal(k_w, (out_dims, in_dims), jnp.float32) * w_std
    bias = jax.random.normal(k_b, (out_dims,), jnp.float32)
    x = jax.random.normal(k_x, (batch, in_dims), jnp.float32)

    # One-time weight prep (transpose + pad), then the Pallas forward.
    w_t, b2 = prepare_linear_params(weight, bias)
    y = linear_forward(x, w_t, b2, out_features=out_dims)
    y = jax.block_until_ready(y)

    # Reference check against plain JAX (same semantics as nn.Linear).
    y_ref = x @ weight.T + bias
    assert y.shape == (batch, out_dims)
    assert jnp.allclose(y, y_ref, atol=1e-5, rtol=1e-5)

    print("KERNEL_OK")
</pallas_src>

<mosaic_0001>
module attributes {stable_mosaic.version = 11 : i64} {
  func.func @_linear_kernel_single_k(%arg0: i32, %arg1: i32, %arg2: memref<8x128xf32, #tpu.memory_space<vmem>>, %arg3: memref<128x128xf32, #tpu.memory_space<vmem>>, %arg4: memref<1x128xf32, #tpu.memory_space<vmem>>, %arg5: memref<8x128xf32, #tpu.memory_space<vmem>>) attributes {dimension_semantics = [#tpu.dimension_semantics<parallel>, #tpu.dimension_semantics<parallel>], iteration_bounds = array<i64: 1, 1>, scalar_prefetch = 0 : i64, scratch_operands = 0 : i64, tpu.core_type = #tpu.core_type<tc>, window_params = [{transform_indices = @transform_0, window_bounds = array<i64: 8, 128>}, {transform_indices = @transform_1, window_bounds = array<i64: 128, 128>}, {transform_indices = @transform_2, window_bounds = array<i64: 1, 128>}, {transform_indices = @transform_3, window_bounds = array<i64: 8, 128>}]} {
    %c0 = arith.constant 0 : index
    %c0_0 = arith.constant 0 : index
    %0 = vector.load %arg2[%c0, %c0_0] : memref<8x128xf32, #tpu.memory_space<vmem>>, vector<8x128xf32>
    %c0_1 = arith.constant 0 : index
    %c0_2 = arith.constant 0 : index
    %1 = vector.load %arg3[%c0_1, %c0_2] : memref<128x128xf32, #tpu.memory_space<vmem>>, vector<128x128xf32>
    %cst = arith.constant dense<0.000000e+00> : vector<8x128xf32>
    %2 = tpu.matmul %0, %1, %cst {dimension_numbers = #tpu.dot_dimension_numbers<[1], [0], [0], [1], [0, 0, 1, 1], [], []>} : vector<8x128xf32>, vector<128x128xf32>, vector<8x128xf32> -> vector<8x128xf32>
    %c0_3 = arith.constant 0 : index
    %c0_4 = arith.constant 0 : index
    %3 = vector.load %arg4[%c0_3, %c0_4] : memref<1x128xf32, #tpu.memory_space<vmem>>, vector<1x128xf32>
    %4 = vector.broadcast %3 : vector<1x128xf32> to vector<8x128xf32>
    %5 = arith.addf %2, %4 : vector<8x128xf32>
    %c0_5 = arith.constant 0 : index
    %c0_6 = arith.constant 0 : index
    %6 = vector.load %arg5[%c0_5, %c0_6] : memref<8x128xf32, #tpu.memory_space<vmem>>, vector<8x128xf32>
    tpu.vector_store %arg5[%c0_5, %c0_6], %5 {strides = array<i32>} : memref<8x128xf32, #tpu.memory_space<vmem>>, vector<8x128xf32>,
    return
  }
  func.func @transform_0(%arg0: i32, %arg1: i32) -> (i32, i32) {
    %c0_i32 = arith.constant 0 : i32
    %c0_i32_0 = arith.constant 0 : i32
    return %arg0, %c0_i32 : i32, i32
  }
  func.func @transform_1(%arg0: i32, %arg1: i32) -> (i32, i32) {
    %c0_i32 = arith.constant 0 : i32
    %c0_i32_0 = arith.constant 0 : i32
    return %c0_i32, %arg1 : i32, i32
  }
  func.func @transform_2(%arg0: i32, %arg1: i32) -> (i32, i32) {
    %c0_i32 = arith.constant 0 : i32
    %c0_i32_0 = arith.constant 0 : i32
    return %c0_i32, %arg1 : i32, i32
  }
  func.func @transform_3(%arg0: i32, %arg1: i32) -> (i32, i32) {
    %c0_i32 = arith.constant 0 : i32
    return %arg0, %arg1 : i32, i32
  }
}

</mosaic_0001>

<llo_original>
// kernel: linear_forward.1
$region0: #{linear_forward.1}
  #allocation0 [shape = 'u32[]', space=smem, size = 0x4, offset = 0x4, fixed_abs, tag = 'smem constant byte address 0x4 - core index']
  #allocation1 [shape = 'u32[144,128]{1,0:T(1,128)}', space=vmem, size = 0x12000, scoped, tag = 'internal scratch']
  %s0 = inlined_call_operand.vmem [shape: f32[8,128], index: 0, kind: input, shape index: {}]
  %s1 = inlined_call_operand.hbm [shape: f32[128,128], index: 1, kind: input, shape index: {}]
  %s2 = inlined_call_operand.vmem [shape: f32[1,128], index: 2, kind: input, shape index: {}]
  %s3 = inlined_call_operand.hbm [shape: f32[8,128], index: 3, kind: output, shape index: {}]
  %s4 = sld [smem:[#allocation0]]
  $region26: #{linear_forward.1} parent=0
    _
  %s6 = ssub.s32 1, %s4
  %s7 = scalar_select 0, %s6, %s4
  $region1: #{linear_forward.1} parent=0
    #allocation2 [shape = 'u8[65536]{0}', space=vmem, size = 0x10000, scoped, tag = 'input window, operand 1, single buffered']
    #allocation3 [shape = 's32[1]{0}', space=sflag, size = 0x4, scoped, tag = 'scoped memory for linear_forward.1']
    #allocation4 [shape = 's32[1]{0}', space=sflag, size = 0x4, scoped, tag = 'scoped memory for linear_forward.1']
    #allocation5 [shape = 'u8[4096]{0}', space=vmem, size = 0x1000, scoped, tag = 'output window, operand 0, single buffered']
    %8 = vsyncpa [#allocation3], 0
    %9 = vsyncpa [#allocation4], 0
    // Predicated region
    $region2: #{linear_forward.1} parent=1 // pred_check
      _
    $region3: #{linear_forward.1} parent=1 // pred_check_branch
      %11 = sbr.rel (0) target = $region5
    $region4: #{linear_forward.1} parent=1 // pred_region
      _
    $region5: #{linear_forward.1} parent=1 // pred_fallthru
      _
    // Predicated region
    $region6: #{linear_forward.1} parent=1 // pred_check
      _
    $region7: #{linear_forward.1} parent=1 // pred_check_branch
      %13 = sbr.rel (0) target = $region9
    $region8: #{linear_forward.1} parent=1 // pred_region
      %s15 = ssub.s32 2048, 2048
      %16 = vsyncadd [#allocation3], %s15
      %s17 = sshll.u32 [#allocation2], 4
      %s18 = int_to_ptr.vmem [resolvable:$true] %s17
      %23 = dma.hbm_to_vmem [thread:$0]  %s1, 2048, %s18, [#allocation3], 128, 128, 8
    $region9: #{linear_forward.1} parent=1 // pred_fallthru
      _
    // Predicated region
    $region10: #{linear_forward.1} parent=1 // pred_check
      _
    $region11: #{linear_forward.1} parent=1 // pred_check_branch
      %25 = sbr.rel (0) target = $region13
    $region12: #{linear_forward.1} parent=1 // pred_region
      _
    $region13: #{linear_forward.1} parent=1 // pred_fallthru
      _
    // Predicated region
    $region14: #{linear_forward.1} parent=1 // pred_check
      _
    $region15: #{linear_forward.1} parent=1 // pred_check_branch
      %27 = sbr.rel (0) target = $region17
    $region16: #{linear_forward.1} parent=1 // pred_region
      %28 = dma.done [#allocation3], 2048
    $region17: #{linear_forward.1} parent=1 // pred_fallthru
      _
    %v29 = vld [vmem:[%s0] sm:$0xff]
    %v30 = vld [vmem:[#allocation2] sm:$0xff]
    %v31 = vld [vmem:[#allocation2 + $0x8] sm:$0xff]
    %v32 = vld [vmem:[#allocation2 + $0x10] sm:$0xff]
    %v33 = vld [vmem:[#allocation2 + $0x18] sm:$0xff]
    %v34 = vld [vmem:[#allocation2 + $0x20] sm:$0xff]
    %v35 = vld [vmem:[#allocation2 + $0x28] sm:$0xff]
    %v36 = vld [vmem:[#allocation2 + $0x30] sm:$0xff]
    %v37 = vld [vmem:[#allocation2 + $0x38] sm:$0xff]
    %v38 = vld [vmem:[#allocation2 + $0x40] sm:$0xff]
    %v39 = vld [vmem:[#allocation2 + $0x48] sm:$0xff]
    %v40 = vld [vmem:[#allocation2 + $0x50] sm:$0xff]
    %v41 = vld [vmem:[#allocation2 + $0x58] sm:$0xff]
    %v42 = vld [vmem:[#allocation2 + $0x60] sm:$0xff]
    %v43 = vld [vmem:[#allocation2 + $0x68] sm:$0xff]
    %v44 = vld [vmem:[#allocation2 + $0x70] sm:$0xff]
    %v45 = vld [vmem:[#allocation2 + $0x78] sm:$0xff]
    %v46 = vld [vmem:[%s2] sm:$0x1]
    %v48 = vlaneseq
    %v49 = vshrl.u32 %v48, 7
    %v50 = vsub.s32 0, %v49
    %v51 = vrot.slane %v46, %v50
    %53 = vmatprep.subr.mxu0 0.0
    %54 = vmatpush1.msra.mxu0 %v30
    %55 = vmatprep.subr.mxu0 0.0
    %56 = vmatpush1.msra.mxu0 %v31
    %57 = vmatprep.subr.mxu0 0.0
    %58 = vmatpush1.msra.mxu0 %v32
    %59 = vmatprep.subr.mxu0 0.0
    %60 = vmatpush1.msra.mxu0 %v33
    %61 = vmatprep.subr.mxu0 0.0
    %62 = vmatpush1.msra.mxu0 %v34
    %63 = vmatprep.subr.mxu0 0.0
    %64 = vmatpush1.msra.mxu0 %v35
    %65 = vmatprep.subr.mxu0 0.0
    %66 = vmatpush1.msra.mxu0 %v36
    %67 = vmatprep.subr.mxu0 0.0
    %68 = vmatpush1.msra.mxu0 %v37
    %69 = vmatprep.subr.mxu0 0.0
    %70 = vmatpush1.msra.mxu0 %v38
    %71 = vmatprep.subr.mxu0 0.0
    %72 = vmatpush1.msra.mxu0 %v39
    %73 = vmatprep.subr.mxu0 0.0
    %74 = vmatpush1.msra.mxu0 %v40
    %75 = vmatprep.subr.mxu0 0.0
    %76 = vmatpush1.msra.mxu0 %v41
    %77 = vmatprep.subr.mxu0 0.0
    %78 = vmatpush1.msra.mxu0 %v42
    %79 = vmatprep.subr.mxu0 0.0
    %80 = vmatpush1.msra.mxu0 %v43
    %81 = vmatprep.subr.mxu0 0.0
    %82 = vmatpush1.msra.mxu0 %v44
    %83 = vmatprep.subr.mxu0 0.0
    %84 = vmatpush1.msra.mxu0 %v45
    %85 = vmatprep.subr.mxu0 0.0
    %86 = vmatpush1.msra.mxu0 0.0
    %87 = vmatprep.subr.mxu0 0.0
    %88 = vmatpush1.msra.mxu0 0.0
    %89 = vmatprep.subr.mxu0 0.0
    %90 = vmatpush1.msra.mxu0 0.0
    %91 = vmatprep.subr.mxu0 0.0
    %92 = vmatpush1.msra.mxu0 0.0
    %93 = vmatprep.subr.mxu0 0.0
    %94 = vmatpush1.msra.mxu0 0.0
    %95 = vmatprep.subr.mxu0 0.0
    %96 = vmatpush1.msra.mxu0 0.0
    %97 = vmatprep.subr.mxu0 0.0
    %98 = vmatpush1.msra.mxu0 0.0
    %99 = vmatprep.subr.mxu0 0.0
    %100 = vmatpush1.msra.mxu0 0.0
    %101 = vmatprep.subr.mxu0 0.0
    %102 = vmatpush1.msra.mxu0 0.0
    %103 = vmatprep.subr.mxu0 0.0
    %104 = vmatpush1.msra.mxu0 0.0
    %105 = vmatprep.subr.mxu0 0.0
    %106 = vmatpush1.msra.mxu0 0.0
    %107 = vmatprep.subr.mxu0 0.0
    %108 = vmatpush1.msra.mxu0 0.0
    %109 = vmatprep.subr.mxu0 0.0
    %110 = vmatpush1.msra.mxu0 0.0
    %111 = vmatprep.subr.mxu0 0.0
    %112 = vmatpush1.msra.mxu0 0.0
    %113 = vmatprep.subr.mxu0 0.0
    %114 = vmatpush1.msra.mxu0 0.0
    %115 = vmatprep.subr.mxu0 0.0
    %116 = vmatpush1.msra.mxu0 0.0
    %117 = vmatprep.mubr.f32.mxu0 0.0
    %118 = vmatmul.mubr.f32.gmra.mrb[0].mxu0 %v29
    %v119 = vpop.f32.mrb[0].mxu0
    %v120 = vadd.f32 %v51, %v119
    %v121 = vpop.f32.mrb[0].mxu0
    %122 = vdwg.mxu0
    %123 = vst [vmem:[#allocation5] sm:$0xff] %v120
    // Predicated region
    $region18: #{linear_forward.1} parent=1 // pred_check
      _
    $region19: #{linear_forward.1} parent=1 // pred_check_branch
      %125 = sbr.rel (0) target = $region21
    $region20: #{linear_forward.1} parent=1 // pred_region
      %s127 = ssub.s32 128, 128
      %128 = vsyncadd [#allocation4], %s127
      %s130 = sshll.u32 [#allocation5], 4
      %s131 = int_to_ptr.vmem [resolvable:$true] %s130
      %133 = dma.vmem_to_hbm [thread:$0]  %s131, 128, %s3, [#allocation4]
    $region21: #{linear_forward.1} parent=1 // pred_fallthru
      _
    // Predicated region
    $region22: #{linear_forward.1} parent=1 // pred_check
      _
    $region23: #{linear_forward.1} parent=1 // pred_check_branch
      %135 = sbr.rel (0) target = $region25
    $region24: #{linear_forward.1} parent=1 // pred_region
      %136 = dma.done [#allocation4], 128
    $region25: #{linear_forward.1} parent=1 // pred_fallthru
      _
    %137 = vsyncpa [#allocation3], 1
    %138 = vsyncpa [#allocation4], 1

</llo_original>
